<compile_context>
chip_gen: v6e
topology: v6e:2x2x1
jax: 0.10.0
libtpu: 0.0.40
codegen_flags: <defaults>
</compile_context>

<pallas_src>
import functools

import jax
import jax.numpy as jnp
from jax.experimental import pallas as pl
from jax.experimental.pallas import tpu as pltpu

MARGIN = 2.0
EPS = 1e-6          # matches F.pairwise_distance default eps
_LANE = 128
_MAX_TILE_N = 8192  # ~1 MiB per f32 input block at D=32; amortizes step overhead


def _vmem_budget_bytes():
    """Per-generation budget for the double-buffered input tiles + temporaries."""
    try:
        kind = jax.devices()[0].device_kind.lower()
    except Exception:
        kind = ""
    if "v6" in kind:
        return 20 * 1024 * 1024      # v6e: 32 MiB scoped default / 128 MiB physical
    if "v7" in kind or "7x" in kind:
        return 14 * 1024 * 1024      # v7x: 32 MiB scoped / 64 MiB physical per TC
    return 8 * 1024 * 1024           # v5e & unknown: 16 MiB scoped default


def _pick_tile_n(n_rows, d, itemsize):
    # VMEM stores the (TILE_N, D) blocks with the minor dim padded to 128 lanes.
    lane_d = pl.cdiv(d, _LANE) * _LANE
    # 2 inputs x 2 pipeline buffers (input dtype) + ~2 full-tile f32 working
    # temporaries (upcast / diff / squares) for the tile being computed.
    per_row_bytes = 2 * 2 * lane_d * itemsize + 2 * lane_d * 4
    tile_n = (_vmem_budget_bytes() // per_row_bytes) // _LANE * _LANE
    tile_n = max(_LANE, min(tile_n, _MAX_TILE_N))
    # Never wider than the (128-padded) batch itself.
    tile_n = min(tile_n, pl.cdiv(n_rows, _LANE) * _LANE)
    # Keep >= 2 grid blocks whenever the batch allows it, so the "parallel"
    # grid axis actually shards across both TensorCores on v7x.
    if n_rows >= 2 * _LANE:
        tile_n = min(tile_n, max(_LANE, (n_rows // 2) // _LANE * _LANE))
    return tile_n


def _contrastive_partial_kernel(o1_ref, o2_ref, lbl_ref, out_ref, *,
                                n_valid, tile_n, margin):
    # o1_ref / o2_ref: (TILE_N, D) natural-layout tiles of the inputs
    # lbl_ref:         (1, TILE_N) lane-dense label row
    # out_ref:         (1, 128)    per-block partial sum (lane 0)
    base = pl.program_id(0) * tile_n

    x1 = o1_ref[...].astype(jnp.float32)
    x2 = o2_ref[...].astype(jnp.float32)
    diff = x1 - x2 + EPS
    # Per-pair squared distance: lane-axis reduce over D (VPU/XLU, not MXU).
    dist_sq = jnp.sum(diff * diff, axis=1, keepdims=True)            # (TILE_N, 1)

    # Mask the ragged tail of the last block (replaces the wrapper-side pad).
    row = jax.lax.broadcasted_iota(jnp.int32, (tile_n, 1), 0) + base
    dist_sq = jnp.where(row < n_valid, dist_sq, 0.0)

    dist = jnp.sqrt(dist_sq)                  # only needed for the margin branch
    hinge = jnp.maximum(margin - dist, 0.0)
    # Per-pair weight of the label term, masked so garbage rows contribute 0.
    w = jnp.where(row < n_valid, hinge * hinge - dist_sq, 0.0)       # (TILE_N, 1)

    lane = jax.lax.broadcasted_iota(jnp.int32, (1, tile_n), 1) + base
    lbl = jnp.where(lane < n_valid, lbl_ref[...], 0.0)               # (1, TILE_N)

    # sum_i [(1-l)*d^2 + l*h^2] = sum_i d^2 + sum_i l*(h^2 - d^2)
    #   first term : sublane reduce of the masked column          -> (1, 1)
    #   second term: (1,TILE_N)x(TILE_N,1) matvec on the idle MXU -> (1, 1)
    # (keeps both operands in their natural layouts; no cross-lane relayout)
    d2_sum = jnp.sum(dist_sq, axis=0, keepdims=True)
    lbl_sum = jnp.dot(lbl, w, preferred_element_type=jnp.float32)
    total = d2_sum + lbl_sum                                         # (1, 1)

    out_lane = jax.lax.broadcasted_iota(jnp.int32, (1, _LANE), 1)
    out_ref[...] = jnp.where(out_lane == 0, total, 0.0)


def contrastive_loss(output1, output2, label, *, margin=MARGIN):
    n, d = output1.shape
    label_row = jnp.reshape(label, (1, -1)).astype(jnp.float32)      # (1, N)

    # Tiny-batch convenience only: round very small batches up to one 128-row
    # tile (negligible copy).  Real batches (>= 128 rows) are streamed
    # unpadded; the ragged last block is handled by the in-kernel mask.
    if n < _LANE:
        pad = _LANE - n
        output1 = jnp.pad(output1, ((0, pad), (0, 0)))
        output2 = jnp.pad(output2, ((0, pad), (0, 0)))
        label_row = jnp.pad(label_row, ((0, 0), (0, pad)))
    n_rows = output1.shape[0]

    itemsize = max(output1.dtype.itemsize, output2.dtype.itemsize)
    tile_n = _pick_tile_n(n_rows, d, itemsize)
    num_blocks = pl.cdiv(n_rows, tile_n)
    # TODO(synk): for very large D (where even a 128-row tile overflows the
    # VMEM budget) add a second "arbitrary" grid axis over D with a (TILE_N,1)
    # f32 dist_sq accumulator in scratch.

    kernel = functools.partial(
        _contrastive_partial_kernel,
        n_valid=n, tile_n=tile_n, margin=float(margin))

    cost = pl.CostEstimate(
        flops=int(n_rows * (3 * d + 12)),
        transcendentals=int(n_rows),
        bytes_accessed=int(2 * n_rows * d * itemsize + n_rows * 4
                           + num_blocks * _LANE * 4),
    )

    partial_sums = pl.pallas_call(
        kernel,
        out_shape=jax.ShapeDtypeStruct((1, num_blocks * _LANE), jnp.float32),
        grid_spec=pltpu.PrefetchScalarGridSpec(
            num_scalar_prefetch=0,
            grid=(num_blocks,),
            in_specs=[
                pl.BlockSpec((tile_n, d), lambda i: (i, 0)),
                pl.BlockSpec((tile_n, d), lambda i: (i, 0)),
                pl.BlockSpec((1, tile_n), lambda i: (0, i)),
            ],
            out_specs=pl.BlockSpec((1, _LANE), lambda i: (0, i)),
        ),
        compiler_params=pltpu.CompilerParams(
            dimension_semantics=("parallel",),
        ),
        cost_estimate=cost,
    )(output1, output2, label_row)

    # Final mean over the N valid pairs (tiny reduction over per-block sums).
    return jnp.sum(partial_sums) / n


def _reference_loss(output1, output2, label, margin=MARGIN):
    o1 = output1.astype(jnp.float32)
    o2 = output2.astype(jnp.float32)
    lbl = jnp.reshape(label, (-1, 1)).astype(jnp.float32)
    diff = o1 - o2 + EPS
    dist = jnp.sqrt(jnp.sum(diff * diff, axis=-1, keepdims=True))
    term = (1.0 - lbl) * dist ** 2 + lbl * jnp.maximum(margin - dist, 0.0) ** 2
    return jnp.mean(term)


if __name__ == "__main__":
    key = jax.random.PRNGKey(0)
    k1, k2, k3 = jax.random.split(key, 3)

    N, D = 8, 32  # small shapes: batch of 8 embedding pairs, hidden=32
    output1 = jax.random.normal(k1, (N, D), dtype=jnp.float32)
    output2 = jax.random.normal(k2, (N, D), dtype=jnp.float32)
    # binary labels (0 = similar pair, 1 = dissimilar pair), shape (N, 1)
    label = jax.random.bernoulli(k3, p=0.5, shape=(N, 1)).astype(jnp.float32)

    loss = contrastive_loss(output1, output2, label)
    loss = jax.block_until_ready(loss)

    ref = _reference_loss(output1, output2, label)
    assert jnp.allclose(loss, ref, rtol=1e-5, atol=1e-5), (loss, ref)

    print("KERNEL_OK")
</pallas_src>

<mosaic_0001>
module attributes {stable_mosaic.version = 11 : i64} {
  func.func @_contrastive_partial_kernel(%arg0: i32, %arg1: memref<128x32xf32, #tpu.memory_space<vmem>>, %arg2: memref<128x32xf32, #tpu.memory_space<vmem>>, %arg3: memref<1x128xf32, #tpu.memory_space<vmem>>, %arg4: memref<1x128xf32, #tpu.memory_space<vmem>>) attributes {dimension_semantics = [#tpu.dimension_semantics<parallel>], iteration_bounds = array<i64: 1>, scalar_prefetch = 0 : i64, scratch_operands = 0 : i64, tpu.core_type = #tpu.core_type<tc>, window_params = [{transform_indices = @transform_0, window_bounds = array<i64: 128, 32>}, {transform_indices = @transform_1, window_bounds = array<i64: 128, 32>}, {transform_indices = @transform_2, window_bounds = array<i64: 1, 128>}, {transform_indices = @transform_3, window_bounds = array<i64: 1, 128>}]} {
    %c128_i32 = arith.constant 128 : i32
    %0 = arith.muli %arg0, %c128_i32 : i32
    %c0 = arith.constant 0 : index
    %c0_0 = arith.constant 0 : index
    %1 = vector.load %arg1[%c0, %c0_0] : memref<128x32xf32, #tpu.memory_space<vmem>>, vector<128x32xf32>
    %c0_1 = arith.constant 0 : index
    %c0_2 = arith.constant 0 : index
    %2 = vector.load %arg2[%c0_1, %c0_2] : memref<128x32xf32, #tpu.memory_space<vmem>>, vector<128x32xf32>
    %3 = arith.subf %1, %2 : vector<128x32xf32>
    %cst = arith.constant 9.99999997E-7 : f32
    %4 = vector.broadcast %cst : f32 to vector<128x32xf32>
    %5 = arith.addf %3, %4 : vector<128x32xf32>
    %6 = arith.mulf %5, %5 : vector<128x32xf32>
    %cst_3 = arith.constant dense<0.000000e+00> : vector<128xf32>
    %7 = vector.multi_reduction <add>, %6, %cst_3 [1] : vector<128x32xf32> to vector<128xf32>
    %8 = vector.shape_cast %7 : vector<128xf32> to vector<128x1xf32>
    %9 = tpu.iota {dimensions = array<i32: 0>} : vector<128x1xi32>
    %10 = vector.broadcast %0 : i32 to vector<128x1xi32>
    %11 = arith.addi %9, %10 : vector<128x1xi32>
    %c8_i32 = arith.constant 8 : i32
    %12 = vector.broadcast %c8_i32 : i32 to vector<128x1xi32>
    %13 = arith.cmpi slt, %11, %12 : vector<128x1xi32>
    %cst_4 = arith.constant 0.000000e+00 : f32
    %14 = vector.broadcast %cst_4 : f32 to vector<128x1xf32>
    %15 = arith.select %13, %8, %14 : vector<128x1xi1>, vector<128x1xf32>
    %16 = math.sqrt %15 : vector<128x1xf32>
    %cst_5 = arith.constant 2.000000e+00 : f32
    %17 = vector.broadcast %cst_5 : f32 to vector<128x1xf32>
    %18 = arith.subf %17, %16 : vector<128x1xf32>
    %cst_6 = arith.constant 0.000000e+00 : f32
    %19 = vector.broadcast %cst_6 : f32 to vector<128x1xf32>
    %20 = arith.maximumf %18, %19 : vector<128x1xf32>
    %c8_i32_7 = arith.constant 8 : i32
    %21 = vector.broadcast %c8_i32_7 : i32 to vector<128x1xi32>
    %22 = arith.cmpi slt, %11, %21 : vector<128x1xi32>
    %23 = arith.mulf %20, %20 : vector<128x1xf32>
    %24 = arith.subf %23, %15 : vector<128x1xf32>
    %cst_8 = arith.constant 0.000000e+00 : f32
    %25 = vector.broadcast %cst_8 : f32 to vector<128x1xf32>
    %26 = arith.select %22, %24, %25 : vector<128x1xi1>, vector<128x1xf32>
    %27 = tpu.iota {dimensions = array<i32: 1>} : vector<1x128xi32>
    %28 = vector.broadcast %0 : i32 to vector<1x128xi32>
    %29 = arith.addi %27, %28 : vector<1x128xi32>
    %c8_i32_9 = arith.constant 8 : i32
    %30 = vector.broadcast %c8_i32_9 : i32 to vector<1x128xi32>
    %31 = arith.cmpi slt, %29, %30 : vector<1x128xi32>
    %c0_10 = arith.constant 0 : index
    %c0_11 = arith.constant 0 : index
    %32 = vector.load %arg3[%c0_10, %c0_11] : memref<1x128xf32, #tpu.memory_space<vmem>>, vector<1x128xf32>
    %cst_12 = arith.constant 0.000000e+00 : f32
    %33 = vector.broadcast %cst_12 : f32 to vector<1x128xf32>
    %34 = arith.select %31, %32, %33 : vector<1x128xi1>, vector<1x128xf32>
    %cst_13 = arith.constant dense<0.000000e+00> : vector<1xf32>
    %35 = vector.multi_reduction <add>, %15, %cst_13 [0] : vector<128x1xf32> to vector<1xf32>
    %36 = vector.shape_cast %35 : vector<1xf32> to vector<1x1xf32>
    %cst_14 = arith.constant dense<0.000000e+00> : vector<1x1xf32>
    %37 = tpu.matmul %34, %26, %cst_14 {dimension_numbers = #tpu.dot_dimension_numbers<[1], [0], [0], [1], [0, 0, 1, 1], [], []>} : vector<1x128xf32>, vector<128x1xf32>, vector<1x1xf32> -> vector<1x1xf32>
    %38 = arith.addf %36, %37 : vector<1x1xf32>
    %39 = tpu.iota {dimensions = array<i32: 1>} : vector<1x128xi32>
    %c0_i32 = arith.constant 0 : i32
    %40 = vector.broadcast %c0_i32 : i32 to vector<1x128xi32>
    %41 = arith.cmpi eq, %39, %40 : vector<1x128xi32>
    %cst_15 = arith.constant 0.000000e+00 : f32
    %42 = vector.shape_cast %38 : vector<1x1xf32> to vector<1x1xf32>
    %43 = vector.broadcast %42 : vector<1x1xf32> to vector<1x128xf32>
    %44 = vector.broadcast %cst_15 : f32 to vector<1x128xf32>
    %45 = arith.select %41, %43, %44 : vector<1x128xi1>, vector<1x128xf32>
    %c0_16 = arith.constant 0 : index
    %c0_17 = arith.constant 0 : index
    %46 = vector.load %arg4[%c0_16, %c0_17] : memref<1x128xf32, #tpu.memory_space<vmem>>, vector<1x128xf32>
    tpu.vector_store %arg4[%c0_16, %c0_17], %45 {strides = array<i32>} : memref<1x128xf32, #tpu.memory_space<vmem>>, vector<1x128xf32>,
    return
  }
  func.func @transform_0(%arg0: i32) -> (i32, i32) {
    %c0_i32 = arith.constant 0 : i32
    %c0_i32_0 = arith.constant 0 : i32
    return %arg0, %c0_i32 : i32, i32
  }
  func.func @transform_1(%arg0: i32) -> (i32, i32) {
    %c0_i32 = arith.constant 0 : i32
    %c0_i32_0 = arith.constant 0 : i32
    return %arg0, %c0_i32 : i32, i32
  }
  func.func @transform_2(%arg0: i32) -> (i32, i32) {
    %c0_i32 = arith.constant 0 : i32
    %c0_i32_0 = arith.constant 0 : i32
    return %c0_i32, %arg0 : i32, i32
  }
  func.func @transform_3(%arg0: i32) -> (i32, i32) {
    %c0_i32 = arith.constant 0 : i32
    %c0_i32_0 = arith.constant 0 : i32
    return %c0_i32, %arg0 : i32, i32
  }
}

</mosaic_0001>

<llo_original>
// kernel: tpu_custom_call.1
$region0: #{tpu_custom_call.1}
  #allocation0 [shape = 'u32[]', space=smem, size = 0x4, offset = 0x4, fixed_abs, tag = 'smem constant byte address 0x4 - core index']
  #allocation1 [shape = 'u32[144,128]{1,0:T(1,128)}', space=vmem, size = 0x12000, scoped, tag = 'internal scratch']
  %s0 = inlined_call_operand.vmem [shape: f32[128,32], index: 0, kind: input, shape index: {}]
  %s1 = inlined_call_operand.vmem [shape: f32[128,32], index: 1, kind: input, shape index: {}]
  %s2 = inlined_call_operand.vmem [shape: f32[1,128], index: 2, kind: input, shape index: {}]
  %s3 = inlined_call_operand.hbm [shape: f32[1,128], index: 3, kind: output, shape index: {}]
  %s4 = sld [smem:[#allocation0]]
  $region22: #{tpu_custom_call.1} parent=0
    _
  %s6 = ssub.s32 1, %s4
  %s7 = scalar_select 0, %s6, %s4
  $region1: #{tpu_custom_call.1} parent=0
    #allocation2 [shape = 'u8[512]{0}', space=vmem, size = 0x400, scoped, tag = 'output window, operand 0, single buffered']
    #allocation3 [shape = 's32[1]{0}', space=sflag, size = 0x4, scoped, tag = 'scoped memory for tpu_custom_call.1']
    %8 = vsyncpa [#allocation3], 0
    // Predicated region
    $region2: #{tpu_custom_call.1} parent=1 // pred_check
      _
    $region3: #{tpu_custom_call.1} parent=1 // pred_check_branch
      %10 = sbr.rel (0) target = $region5
    $region4: #{tpu_custom_call.1} parent=1 // pred_region
      _
    $region5: #{tpu_custom_call.1} parent=1 // pred_fallthru
      _
    // Predicated region
    $region6: #{tpu_custom_call.1} parent=1 // pred_check
      _
    $region7: #{tpu_custom_call.1} parent=1 // pred_check_branch
      %12 = sbr.rel (0) target = $region9
    $region8: #{tpu_custom_call.1} parent=1 // pred_region
      _
    $region9: #{tpu_custom_call.1} parent=1 // pred_fallthru
      _
    // Predicated region
    $region10: #{tpu_custom_call.1} parent=1 // pred_check
      _
    $region11: #{tpu_custom_call.1} parent=1 // pred_check_branch
      %14 = sbr.rel (0) target = $region13
    $region12: #{tpu_custom_call.1} parent=1 // pred_region
      _
    $region13: #{tpu_custom_call.1} parent=1 // pred_fallthru
      _
    %s15 = smul.u32 0, 128
    %v16 = vld [vmem:[%s0] sm:$0xff]
    %v17 = vld [vmem:[%s0 + $0x8] sm:$0xff]
    %v18 = vld [vmem:[%s0 + $0x10] sm:$0xff]
    %v19 = vld [vmem:[%s0 + $0x18] sm:$0xff]
    %v20 = vld [vmem:[%s0 + $0x20] sm:$0xff]
    %v21 = vld [vmem:[%s0 + $0x28] sm:$0xff]
    %v22 = vld [vmem:[%s0 + $0x30] sm:$0xff]
    %v23 = vld [vmem:[%s0 + $0x38] sm:$0xff]
    %v24 = vld [vmem:[%s0 + $0x40] sm:$0xff]
    %v25 = vld [vmem:[%s0 + $0x48] sm:$0xff]
    %v26 = vld [vmem:[%s0 + $0x50] sm:$0xff]
    %v27 = vld [vmem:[%s0 + $0x58] sm:$0xff]
    %v28 = vld [vmem:[%s0 + $0x60] sm:$0xff]
    %v29 = vld [vmem:[%s0 + $0x68] sm:$0xff]
    %v30 = vld [vmem:[%s0 + $0x70] sm:$0xff]
    %v31 = vld [vmem:[%s0 + $0x78] sm:$0xff]
    %v32 = vld [vmem:[%s1] sm:$0xff]
    %v33 = vld [vmem:[%s1 + $0x8] sm:$0xff]
    %v34 = vld [vmem:[%s1 + $0x10] sm:$0xff]
    %v35 = vld [vmem:[%s1 + $0x18] sm:$0xff]
    %v36 = vld [vmem:[%s1 + $0x20] sm:$0xff]
    %v37 = vld [vmem:[%s1 + $0x28] sm:$0xff]
    %v38 = vld [vmem:[%s1 + $0x30] sm:$0xff]
    %v39 = vld [vmem:[%s1 + $0x38] sm:$0xff]
    %v40 = vld [vmem:[%s1 + $0x40] sm:$0xff]
    %v41 = vld [vmem:[%s1 + $0x48] sm:$0xff]
    %v42 = vld [vmem:[%s1 + $0x50] sm:$0xff]
    %v43 = vld [vmem:[%s1 + $0x58] sm:$0xff]
    %v44 = vld [vmem:[%s1 + $0x60] sm:$0xff]
    %v45 = vld [vmem:[%s1 + $0x68] sm:$0xff]
    %v46 = vld [vmem:[%s1 + $0x70] sm:$0xff]
    %v47 = vld [vmem:[%s1 + $0x78] sm:$0xff]
    %v48 = vsub.f32 %v16, %v32
    %v49 = vsub.f32 %v17, %v33
    %v50 = vsub.f32 %v18, %v34
    %v51 = vsub.f32 %v19, %v35
    %v52 = vsub.f32 %v20, %v36
    %v53 = vsub.f32 %v21, %v37
    %v54 = vsub.f32 %v22, %v38
    %v55 = vsub.f32 %v23, %v39
    %v56 = vsub.f32 %v24, %v40
    %v57 = vsub.f32 %v25, %v41
    %v58 = vsub.f32 %v26, %v42
    %v59 = vsub.f32 %v27, %v43
    %v60 = vsub.f32 %v28, %v44
    %v61 = vsub.f32 %v29, %v45
    %v62 = vsub.f32 %v30, %v46
    %v63 = vsub.f32 %v31, %v47
    %v64 = vadd.f32 %v48, 1e-06
    %v65 = vadd.f32 %v49, 1e-06
    %v66 = vadd.f32 %v50, 1e-06
    %v67 = vadd.f32 %v51, 1e-06
    %v68 = vadd.f32 %v52, 1e-06
    %v69 = vadd.f32 %v53, 1e-06
    %v70 = vadd.f32 %v54, 1e-06
    %v71 = vadd.f32 %v55, 1e-06
    %v72 = vadd.f32 %v56, 1e-06
    %v73 = vadd.f32 %v57, 1e-06
    %v74 = vadd.f32 %v58, 1e-06
    %v75 = vadd.f32 %v59, 1e-06
    %v76 = vadd.f32 %v60, 1e-06
    %v77 = vadd.f32 %v61, 1e-06
    %v78 = vadd.f32 %v62, 1e-06
    %v79 = vadd.f32 %v63, 1e-06
    %v80 = vmul.f32 %v64, %v64
    %v81 = vmul.f32 %v65, %v65
    %v82 = vmul.f32 %v66, %v66
    %v83 = vmul.f32 %v67, %v67
    %v84 = vmul.f32 %v68, %v68
    %v85 = vmul.f32 %v69, %v69
    %v86 = vmul.f32 %v70, %v70
    %v87 = vmul.f32 %v71, %v71
    %v88 = vmul.f32 %v72, %v72
    %v89 = vmul.f32 %v73, %v73
    %v90 = vmul.f32 %v74, %v74
    %v91 = vmul.f32 %v75, %v75
    %v92 = vmul.f32 %v76, %v76
    %v93 = vmul.f32 %v77, %v77
    %v94 = vmul.f32 %v78, %v78
    %v95 = vmul.f32 %v79, %v79
    %vm96 = vcmask 261120
    %v97 = vsel %vm96, %v80, 0.0
    %98 = vadd.xlane.f32.xlu0 %v97
    %v99 = vpop.xlane.xlu0 %98
    %v100 = vsel %vm96, %v81, 0.0
    %101 = vadd.xlane.f32.xlu0 %v100
    %v102 = vpop.xlane.xlu0 %101
    %v103 = vsel %vm96, %v82, 0.0
    %104 = vadd.xlane.f32.xlu0 %v103
    %v105 = vpop.xlane.xlu0 %104
    %v106 = vsel %vm96, %v83, 0.0
    %107 = vadd.xlane.f32.xlu0 %v106
    %v108 = vpop.xlane.xlu0 %107
    %v109 = vsel %vm96, %v84, 0.0
    %110 = vadd.xlane.f32.xlu0 %v109
    %v111 = vpop.xlane.xlu0 %110
    %v112 = vsel %vm96, %v85, 0.0
    %113 = vadd.xlane.f32.xlu0 %v112
    %v114 = vpop.xlane.xlu0 %113
    %v115 = vsel %vm96, %v86, 0.0
    %116 = vadd.xlane.f32.xlu0 %v115
    %v117 = vpop.xlane.xlu0 %116
    %v118 = vsel %vm96, %v87, 0.0
    %119 = vadd.xlane.f32.xlu0 %v118
    %v120 = vpop.xlane.xlu0 %119
    %v121 = vsel %vm96, %v88, 0.0
    %122 = vadd.xlane.f32.xlu0 %v121
    %v123 = vpop.xlane.xlu0 %122
    %v124 = vsel %vm96, %v89, 0.0
    %125 = vadd.xlane.f32.xlu0 %v124
    %v126 = vpop.xlane.xlu0 %125
    %v127 = vsel %vm96, %v90, 0.0
    %128 = vadd.xlane.f32.xlu0 %v127
    %v129 = vpop.xlane.xlu0 %128
    %v130 = vsel %vm96, %v91, 0.0
    %131 = vadd.xlane.f32.xlu0 %v130
    %v132 = vpop.xlane.xlu0 %131
    %v133 = vsel %vm96, %v92, 0.0
    %134 = vadd.xlane.f32.xlu0 %v133
    %v135 = vpop.xlane.xlu0 %134
    %v136 = vsel %vm96, %v93, 0.0
    %137 = vadd.xlane.f32.xlu0 %v136
    %v138 = vpop.xlane.xlu0 %137
    %v139 = vsel %vm96, %v94, 0.0
    %140 = vadd.xlane.f32.xlu0 %v139
    %v141 = vpop.xlane.xlu0 %140
    %v142 = vsel %vm96, %v95, 0.0
    %143 = vadd.xlane.f32.xlu0 %v142
    %v144 = vpop.xlane.xlu0 %143
    %v145 = vlaneseq
    %v146 = vshrl.u32 %v145, 7
    %v147 = vadd.s32 %v146, 8
    %v148 = vadd.s32 %v146, 16
    %v149 = vadd.s32 %v146, 24
    %v150 = vadd.s32 %v146, 32
    %v151 = vadd.s32 %v146, 40
    %v152 = vadd.s32 %v146, 48
    %v153 = vadd.s32 %v146, 56
    %v154 = vadd.s32 %v146, 64
    %v155 = vadd.s32 %v146, 72
    %v156 = vadd.s32 %v146, 80
    %v157 = vadd.s32 %v146, 88
    %v158 = vadd.s32 %v146, 96
    %v159 = vadd.s32 %v146, 104
    %v160 = vadd.s32 %v146, 112
    %v161 = vadd.s32 %v146, 120
    %v162 = vstv %s15
    %v163 = vadd.s32 %v146, %v162
    %v164 = vadd.s32 %v147, %v162
    %v165 = vadd.s32 %v148, %v162
    %v166 = vadd.s32 %v149, %v162
    %v167 = vadd.s32 %v150, %v162
    %v168 = vadd.s32 %v151, %v162
    %v169 = vadd.s32 %v152, %v162
    %v170 = vadd.s32 %v153, %v162
    %v171 = vadd.s32 %v154, %v162
    %v172 = vadd.s32 %v155, %v162
    %v173 = vadd.s32 %v156, %v162
    %v174 = vadd.s32 %v157, %v162
    %v175 = vadd.s32 %v158, %v162
    %v176 = vadd.s32 %v159, %v162
    %v177 = vadd.s32 %v160, %v162
    %v178 = vadd.s32 %v161, %v162
    %vm179 = vcmp.lt.s32.totalorder %v163, 8
    %vm180 = vcmp.lt.s32.totalorder %v164, 8
    %vm181 = vcmp.lt.s32.totalorder %v165, 8
    %vm182 = vcmp.lt.s32.totalorder %v166, 8
    %vm183 = vcmp.lt.s32.totalorder %v167, 8
    %vm184 = vcmp.lt.s32.totalorder %v168, 8
    %vm185 = vcmp.lt.s32.totalorder %v169, 8
    %vm186 = vcmp.lt.s32.totalorder %v170, 8
    %vm187 = vcmp.lt.s32.totalorder %v171, 8
    %vm188 = vcmp.lt.s32.totalorder %v172, 8
    %vm189 = vcmp.lt.s32.totalorder %v173, 8
    %vm190 = vcmp.lt.s32.totalorder %v174, 8
    %vm191 = vcmp.lt.s32.totalorder %v175, 8
    %vm192 = vcmp.lt.s32.totalorder %v176, 8
    %vm193 = vcmp.lt.s32.totalorder %v177, 8
    %vm194 = vcmp.lt.s32.totalorder %v178, 8
    %v195 = vsel %vm179, %v99, 0.0
    %v196 = vsel %vm180, %v102, 0.0
    %v197 = vsel %vm181, %v105, 0.0
    %v198 = vsel %vm182, %v108, 0.0
    %v199 = vsel %vm183, %v111, 0.0
    %v200 = vsel %vm184, %v114, 0.0
    %v201 = vsel %vm185, %v117, 0.0
    %v202 = vsel %vm186, %v120, 0.0
    %v203 = vsel %vm187, %v123, 0.0
    %v204 = vsel %vm188, %v126, 0.0
    %v205 = vsel %vm189, %v129, 0.0
    %v206 = vsel %vm190, %v132, 0.0
    %v207 = vsel %vm191, %v135, 0.0
    %v208 = vsel %vm192, %v138, 0.0
    %v209 = vsel %vm193, %v141, 0.0
    %v210 = vsel %vm194, %v144, 0.0
    %v211 = vrsqrt.pop %v195
    %v212 = vmul.f32 %v195, %v211
    %vm213 = vcmp.eq.f32.partialorder %v195, inf
    %v214 = vsel %vm213, %v195, %v212
    %vm215 = vcmp.eq.f32.partialorder %v195, 0.0
    %v216 = vand.u32 %v195, 2147483648
    %v217 = vsel %vm215, %v216, %v214
    %v218 = vrsqrt.pop %v196
    %v219 = vmul.f32 %v196, %v218
    %vm220 = vcmp.eq.f32.partialorder %v196, inf
    %v221 = vsel %vm220, %v196, %v219
    %vm222 = vcmp.eq.f32.partialorder %v196, 0.0
    %v223 = vand.u32 %v196, 2147483648
    %v224 = vsel %vm222, %v223, %v221
    %v225 = vrsqrt.pop %v197
    %v226 = vmul.f32 %v197, %v225
    %vm227 = vcmp.eq.f32.partialorder %v197, inf
    %v228 = vsel %vm227, %v197, %v226
    %vm229 = vcmp.eq.f32.partialorder %v197, 0.0
    %v230 = vand.u32 %v197, 2147483648
    %v231 = vsel %vm229, %v230, %v228
    %v232 = vrsqrt.pop %v198
    %v233 = vmul.f32 %v198, %v232
    %vm234 = vcmp.eq.f32.partialorder %v198, inf
    %v235 = vsel %vm234, %v198, %v233
    %vm236 = vcmp.eq.f32.partialorder %v198, 0.0
    %v237 = vand.u32 %v198, 2147483648
    %v238 = vsel %vm236, %v237, %v235
    %v239 = vrsqrt.pop %v199
    %v240 = vmul.f32 %v199, %v239
    %vm241 = vcmp.eq.f32.partialorder %v199, inf
    %v242 = vsel %vm241, %v199, %v240
    %vm243 = vcmp.eq.f32.partialorder %v199, 0.0
    %v244 = vand.u32 %v199, 2147483648
    %v245 = vsel %vm243, %v244, %v242
    %v246 = vrsqrt.pop %v200
    %v247 = vmul.f32 %v200, %v246
    %vm248 = vcmp.eq.f32.partialorder %v200, inf
    %v249 = vsel %vm248, %v200, %v247
    %vm250 = vcmp.eq.f32.partialorder %v200, 0.0
    %v251 = vand.u32 %v200, 2147483648
    %v252 = vsel %vm250, %v251, %v249
    %v253 = vrsqrt.pop %v201
    %v254 = vmul.f32 %v201, %v253
    %vm255 = vcmp.eq.f32.partialorder %v201, inf
    %v256 = vsel %vm255, %v201, %v254
    %vm257 = vcmp.eq.f32.partialorder %v201, 0.0
    %v258 = vand.u32 %v201, 2147483648
    %v259 = vsel %vm257, %v258, %v256
    %v260 = vrsqrt.pop %v202
    %v261 = vmul.f32 %v202, %v260
    %vm262 = vcmp.eq.f32.partialorder %v202, inf
    %v263 = vsel %vm262, %v202, %v261
    %vm264 = vcmp.eq.f32.partialorder %v202, 0.0
    %v265 = vand.u32 %v202, 2147483648
    %v266 = vsel %vm264, %v265, %v263
    %v267 = vrsqrt.pop %v203
    %v268 = vmul.f32 %v203, %v267
    %vm269 = vcmp.eq.f32.partialorder %v203, inf
    %v270 = vsel %vm269, %v203, %v268
    %vm271 = vcmp.eq.f32.partialorder %v203, 0.0
    %v272 = vand.u32 %v203, 2147483648
    %v273 = vsel %vm271, %v272, %v270
    %v274 = vrsqrt.pop %v204
    %v275 = vmul.f32 %v204, %v274
    %vm276 = vcmp.eq.f32.partialorder %v204, inf
    %v277 = vsel %vm276, %v204, %v275
    %vm278 = vcmp.eq.f32.partialorder %v204, 0.0
    %v279 = vand.u32 %v204, 2147483648
    %v280 = vsel %vm278, %v279, %v277
    %v281 = vrsqrt.pop %v205
    %v282 = vmul.f32 %v205, %v281
    %vm283 = vcmp.eq.f32.partialorder %v205, inf
    %v284 = vsel %vm283, %v205, %v282
    %vm285 = vcmp.eq.f32.partialorder %v205, 0.0
    %v286 = vand.u32 %v205, 2147483648
    %v287 = vsel %vm285, %v286, %v284
    %v288 = vrsqrt.pop %v206
    %v289 = vmul.f32 %v206, %v288
    %vm290 = vcmp.eq.f32.partialorder %v206, inf
    %v291 = vsel %vm290, %v206, %v289
    %vm292 = vcmp.eq.f32.partialorder %v206, 0.0
    %v293 = vand.u32 %v206, 2147483648
    %v294 = vsel %vm292, %v293, %v291
    %v295 = vrsqrt.pop %v207
    %v296 = vmul.f32 %v207, %v295
    %vm297 = vcmp.eq.f32.partialorder %v207, inf
    %v298 = vsel %vm297, %v207, %v296
    %vm299 = vcmp.eq.f32.partialorder %v207, 0.0
    %v300 = vand.u32 %v207, 2147483648
    %v301 = vsel %vm299, %v300, %v298
    %v302 = vrsqrt.pop %v208
    %v303 = vmul.f32 %v208, %v302
    %vm304 = vcmp.eq.f32.partialorder %v208, inf
    %v305 = vsel %vm304, %v208, %v303
    %vm306 = vcmp.eq.f32.partialorder %v208, 0.0
    %v307 = vand.u32 %v208, 2147483648
    %v308 = vsel %vm306, %v307, %v305
    %v309 = vrsqrt.pop %v209
    %v310 = vmul.f32 %v209, %v309
    %vm311 = vcmp.eq.f32.partialorder %v209, inf
    %v312 = vsel %vm311, %v209, %v310
    %vm313 = vcmp.eq.f32.partialorder %v209, 0.0
    %v314 = vand.u32 %v209, 2147483648
    %v315 = vsel %vm313, %v314, %v312
    %v316 = vrsqrt.pop %v210
    %v317 = vmul.f32 %v210, %v316
    %vm318 = vcmp.eq.f32.partialorder %v210, inf
    %v319 = vsel %vm318, %v210, %v317
    %vm320 = vcmp.eq.f32.partialorder %v210, 0.0
    %v321 = vand.u32 %v210, 2147483648
    %v322 = vsel %vm320, %v321, %v319
    %v323 = vsub.f32 2.0, %v217
    %v324 = vsub.f32 2.0, %v224
    %v325 = vsub.f32 2.0, %v231
    %v326 = vsub.f32 2.0, %v238
    %v327 = vsub.f32 2.0, %v245
    %v328 = vsub.f32 2.0, %v252
    %v329 = vsub.f32 2.0, %v259
    %v330 = vsub.f32 2.0, %v266
    %v331 = vsub.f32 2.0, %v273
    %v332 = vsub.f32 2.0, %v280
    %v333 = vsub.f32 2.0, %v287
    %v334 = vsub.f32 2.0, %v294
    %v335 = vsub.f32 2.0, %v301
    %v336 = vsub.f32 2.0, %v308
    %v337 = vsub.f32 2.0, %v315
    %v338 = vsub.f32 2.0, %v322
    %v339 = vmax.f32 %v323, 0.0
    %v340 = vmax.f32 %v324, 0.0
    %v341 = vmax.f32 %v325, 0.0
    %v342 = vmax.f32 %v326, 0.0
    %v343 = vmax.f32 %v327, 0.0
    %v344 = vmax.f32 %v328, 0.0
    %v345 = vmax.f32 %v329, 0.0
    %v346 = vmax.f32 %v330, 0.0
    %v347 = vmax.f32 %v331, 0.0
    %v348 = vmax.f32 %v332, 0.0
    %v349 = vmax.f32 %v333, 0.0
    %v350 = vmax.f32 %v334, 0.0
    %v351 = vmax.f32 %v335, 0.0
    %v352 = vmax.f32 %v336, 0.0
    %v353 = vmax.f32 %v337, 0.0
    %v354 = vmax.f32 %v338, 0.0
    %v355 = vmul.f32 %v339, %v339
    %v356 = vmul.f32 %v340, %v340
    %v357 = vmul.f32 %v341, %v341
    %v358 = vmul.f32 %v342, %v342
    %v359 = vmul.f32 %v343, %v343
    %v360 = vmul.f32 %v344, %v344
    %v361 = vmul.f32 %v345, %v345
    %v362 = vmul.f32 %v346, %v346
    %v363 = vmul.f32 %v347, %v347
    %v364 = vmul.f32 %v348, %v348
    %v365 = vmul.f32 %v349, %v349
    %v366 = vmul.f32 %v350, %v350
    %v367 = vmul.f32 %v351, %v351
    %v368 = vmul.f32 %v352, %v352
    %v369 = vmul.f32 %v353, %v353
    %v370 = vmul.f32 %v354, %v354
    %v371 = vsub.f32 %v355, %v195
    %v372 = vsub.f32 %v356, %v196
    %v373 = vsub.f32 %v357, %v197
    %v374 = vsub.f32 %v358, %v198
    %v375 = vsub.f32 %v359, %v199
    %v376 = vsub.f32 %v360, %v200
    %v377 = vsub.f32 %v361, %v201
    %v378 = vsub.f32 %v362, %v202
    %v379 = vsub.f32 %v363, %v203
    %v380 = vsub.f32 %v364, %v204
    %v381 = vsub.f32 %v365, %v205
    %v382 = vsub.f32 %v366, %v206
    %v383 = vsub.f32 %v367, %v207
    %v384 = vsub.f32 %v368, %v208
    %v385 = vsub.f32 %v369, %v209
    %v386 = vsub.f32 %v370, %v210
    %v387 = vsel %vm179, %v371, 0.0
    %v388 = vsel %vm180, %v372, 0.0
    %v389 = vsel %vm181, %v373, 0.0
    %v390 = vsel %vm182, %v374, 0.0
    %v391 = vsel %vm183, %v375, 0.0
    %v392 = vsel %vm184, %v376, 0.0
    %v393 = vsel %vm185, %v377, 0.0
    %v394 = vsel %vm186, %v378, 0.0
    %v395 = vsel %vm187, %v379, 0.0
    %v396 = vsel %vm188, %v380, 0.0
    %v397 = vsel %vm189, %v381, 0.0
    %v398 = vsel %vm190, %v382, 0.0
    %v399 = vsel %vm191, %v383, 0.0
    %v400 = vsel %vm192, %v384, 0.0
    %v401 = vsel %vm193, %v385, 0.0
    %v402 = vsel %vm194, %v386, 0.0
    %v403 = vlaneseq
    %v404 = vand.u32 %v403, 127
    %v405 = vadd.s32 %v404, %v162
    %vm406 = vcmp.lt.s32.totalorder %v405, 8
    %v407 = vld [vmem:[%s2] sm:$0x1]
    %v408 = vsel %vm406, %v407, 0.0
    %v409 = vadd.f32 %v195, %v196
    %v410 = vadd.f32 %v409, %v197
    %v411 = vadd.f32 %v410, %v198
    %v412 = vadd.f32 %v411, %v199
    %v413 = vadd.f32 %v412, %v200
    %v414 = vadd.f32 %v413, %v201
    %v415 = vadd.f32 %v414, %v202
    %v416 = vadd.f32 %v415, %v203
    %v417 = vadd.f32 %v416, %v204
    %v418 = vadd.f32 %v417, %v205
    %v419 = vadd.f32 %v418, %v206
    %v420 = vadd.f32 %v419, %v207
    %v421 = vadd.f32 %v420, %v208
    %v422 = vadd.f32 %v421, %v209
    %v423 = vadd.f32 %v422, %v210
    %v424 = vrot.slane %v423, 4
    %v425 = vadd.f32 %v423, %v424
    %v426 = vrot.slane %v425, 2
    %v427 = vadd.f32 %v425, %v426
    %v428 = vrot.slane %v427, 1
    %v429 = vadd.f32 %v427, %v428
    %430 = vmatprep.subr.mxu0 0.0
    %431 = vmatpush1.msra.mxu0 %v402
    %432 = vmatprep.subr.mxu0 0.0
    %433 = vmatpush1.msra.mxu0 %v401
    %434 = vmatprep.subr.mxu0 0.0
    %435 = vmatpush1.msra.mxu0 %v400
    %436 = vmatprep.subr.mxu0 0.0
    %437 = vmatpush1.msra.mxu0 %v399
    %438 = vmatprep.subr.mxu0 0.0
    %439 = vmatpush1.msra.mxu0 %v398
    %440 = vmatprep.subr.mxu0 0.0
    %441 = vmatpush1.msra.mxu0 %v397
    %442 = vmatprep.subr.mxu0 0.0
    %443 = vmatpush1.msra.mxu0 %v396
    %444 = vmatprep.subr.mxu0 0.0
    %445 = vmatpush1.msra.mxu0 %v395
    %446 = vmatprep.subr.mxu0 0.0
    %447 = vmatpush1.msra.mxu0 %v394
    %448 = vmatprep.subr.mxu0 0.0
    %449 = vmatpush1.msra.mxu0 %v393
    %450 = vmatprep.subr.mxu0 0.0
    %451 = vmatpush1.msra.mxu0 %v392
    %452 = vmatprep.subr.mxu0 0.0
    %453 = vmatpush1.msra.mxu0 %v391
    %454 = vmatprep.subr.mxu0 0.0
    %455 = vmatpush1.msra.mxu0 %v390
    %456 = vmatprep.subr.mxu0 0.0
    %457 = vmatpush1.msra.mxu0 %v389
    %458 = vmatprep.subr.mxu0 0.0
    %459 = vmatpush1.msra.mxu0 %v388
    %460 = vmatprep.subr.mxu0 0.0
    %461 = vmatpush1.msra.mxu0 %v387
    %462 = vmatprep.subr.mxu0 0.0
    %463 = vmatpush2.msra.mxu0 0.0
    %464 = vmatprep.subr.mxu0 0.0
    %465 = vmatpush2.msra.mxu0 0.0
    %466 = vmatprep.subr.mxu0 0.0
    %467 = vmatpush2.msra.mxu0 0.0
    %468 = vmatprep.subr.mxu0 0.0
    %469 = vmatpush2.msra.mxu0 0.0
    %470 = vmatprep.subr.mxu0 0.0
    %471 = vmatpush2.msra.mxu0 0.0
    %472 = vmatprep.subr.mxu0 0.0
    %473 = vmatpush2.msra.mxu0 0.0
    %474 = vmatprep.subr.mxu0 0.0
    %475 = vmatpush2.msra.mxu0 0.0
    %476 = vmatprep.subr.mxu0 0.0
    %477 = vmatpush2.msra.mxu0 0.0
    %478 = vmatprep.subr.mxu0 0.0
    %479 = vmatpush2.msra.mxu0 0.0
    %480 = vmatprep.subr.mxu0 0.0
    %481 = vmatpush2.msra.mxu0 0.0
    %482 = vmatprep.subr.mxu0 0.0
    %483 = vmatpush2.msra.mxu0 0.0
    %484 = vmatprep.subr.mxu0 0.0
    %485 = vmatpush2.msra.mxu0 0.0
    %486 = vmatprep.subr.mxu0 0.0
    %487 = vmatpush2.msra.mxu0 0.0
    %488 = vmatprep.subr.mxu0 0.0
    %489 = vmatpush2.msra.mxu0 0.0
    %490 = vmatprep.subr.mxu0 0.0
    %491 = vmatpush2.msra.mxu0 0.0
    %492 = vmatprep.subr.mxu0 0.0
    %493 = vmatpush2.msra.mxu0 0.0
    %494 = vmatprep.mubr.f32.mxu0 0.0
    %495 = vmatmul.mubr.f32.gmra.mxu0 %v408
    %v496 = vpop.f32.mrf.mxu0
    %v497 = vadd.f32 0.0, %v496
    %v498 = vpop.f32.mrf.mxu0
    %499 = vdwg.mxu0
    %v500 = vadd.f32 %v429, %v497
    %vm501 = vcmp.eq.s32.totalorder %v404, 0
    %503 = vset.pattern.permute.xlu0 0
    %504 = vperm.xlu0 %503, %v500
    %v505 = vpop.permute.xlu0 %504
    %v507 = vsel %vm501, %v505, 0.0
    %508 = vst [vmem:[#allocation2] sm:$0x1] %v507
    // Predicated region
    $region14: #{tpu_custom_call.1} parent=1 // pred_check
      _
    $region15: #{tpu_custom_call.1} parent=1 // pred_check_branch
      %510 = sbr.rel (0) target = $region17
    $region16: #{tpu_custom_call.1} parent=1 // pred_region
      %s512 = ssub.s32 16, 16
      %513 = vsyncadd [#allocation3], %s512
      %s515 = sshll.u32 [#allocation2], 4
      %s516 = int_to_ptr.vmem [resolvable:$true] %s515
      %518 = dma.vmem_to_hbm [thread:$0]  %s516, 16, %s3, [#allocation3]
    $region17: #{tpu_custom_call.1} parent=1 // pred_fallthru
      _
    // Predicated region
    $region18: #{tpu_custom_call.1} parent=1 // pred_check
      _
    $region19: #{tpu_custom_call.1} parent=1 // pred_check_branch
      %520 = sbr.rel (0) target = $region21
    $region20: #{tpu_custom_call.1} parent=1 // pred_region
      %521 = dma.done [#allocation3], 16
    $region21: #{tpu_custom_call.1} parent=1 // pred_fallthru
      _
    %522 = vsyncpa [#allocation3], 1

</llo_original>
